<compile_context>
chip_gen: v7x
topology: tpu7x:2x2x1
jax: 0.10.0
libtpu: 0.0.40
codegen_flags: <defaults>
</compile_context>

<pallas_src>
import functools

import jax
import jax.numpy as jnp
from jax import lax
from jax.experimental import pallas as pl
from jax.experimental.pallas import tpu as pltpu


def _round_up(v, m):
    return (v + m - 1) // m * m


def _mlp_kernel(xt_ref, w1_ref, b1_ref, w2_ref, b2_ref, ot_ref, *,
                f_is_one, o_is_one, chunk, n_chunks):
    # xt_ref: (F, TB)
    # w1_ref: (H, F)                 (i.e. (H, 1) when F == 1)
    # b1_ref: (H, 1) f32
    # w2_ref: (O, H), or (H, 1) when O == 1 (pre-transposed in the wrapper)
    # b2_ref: (O, 1) f32
    # ot_ref: (O, TB)
    w1 = w1_ref[...]
    b1 = b1_ref[...]
    w2 = w2_ref[...]
    b2 = b2_ref[...]

    def body(c, carry):
        off = pl.multiple_of(c * chunk, chunk)
        xt = xt_ref[:, pl.ds(off, chunk)]                      # (F, C)

        if f_is_one:
            # K=1 matmul degenerates on the MXU -> VPU broadcast multiply.
            h = w1.astype(jnp.float32) * xt.astype(jnp.float32)          # (H, C)
        else:
            h = jnp.dot(w1, xt, preferred_element_type=jnp.float32)      # (H, C)
        h = jnp.maximum(h + b1, 0.0)                                     # f32

        if o_is_one:
            # M=1 matmul -> VPU multiply + sublane reduction (XLU).
            y = jnp.sum(w2.astype(jnp.float32) * h, axis=0, keepdims=True)  # (1, C)
        else:
            y = jnp.dot(w2, h.astype(w2.dtype),
                        preferred_element_type=jnp.float32)              # (O, C)
        y = y + b2

        ot_ref[:, pl.ds(off, chunk)] = y.astype(ot_ref.dtype)
        return carry

    lax.fori_loop(0, n_chunks, body, 0, unroll=(n_chunks <= 8))


def mlp_forward(x, w1, b1, w2, b2, *, block_batch=4096, compute_dtype=None):
    """Forward pass of `net`: relu(x @ w1.T + b1) @ w2.T + b2.

    x:  (batch, n_feature)
    w1: (n_hidden, n_feature), b1: (n_hidden,)
    w2: (n_output, n_hidden),  b2: (n_output,)
    """
    batch, n_feature = x.shape
    n_hidden = w1.shape[0]
    n_output = w2.shape[0]
    out_dtype = x.dtype

    f_is_one = (n_feature == 1)
    o_is_one = (n_output == 1)

    # Batch tile on the lane axis (multiple of 128). No padding of the array:
    # the ragged last block is handled by Pallas' masked edge stores.
    block_batch = max(128, _round_up(block_batch, 128))
    tb = min(block_batch, _round_up(batch, 128))

    # Inner compute chunk (lanes) -- keeps the (H, chunk) f32 hidden activation
    # within ~vreg-file size while the DMA tile (tb) stays big.
    chunk = tb
    for cand in (512, 256, 128):
        if cand <= tb and tb % cand == 0:
            chunk = cand
            break
    n_chunks = tb // chunk

    # Transpose once in the wrapper (for F == 1 this is effectively a reshape).
    xt = x.T                                     # (F, batch)
    if compute_dtype is not None:
        xt = xt.astype(compute_dtype)
        w1 = w1.astype(compute_dtype)
        w2 = w2.astype(compute_dtype)

    b1_col = b1.astype(jnp.float32).reshape(n_hidden, 1)
    b2_col = b2.astype(jnp.float32).reshape(n_output, 1)

    if o_is_one:
        w2_arg = w2.reshape(1, n_hidden).T       # (H, 1): column for VPU path
        w2_block = (n_hidden, 1)
    else:
        w2_arg = w2                              # (O, H)
        w2_block = (n_output, n_hidden)

    grid = (pl.cdiv(batch, tb),)

    itemsize_in = jnp.dtype(xt.dtype).itemsize
    itemsize_out = jnp.dtype(out_dtype).itemsize
    cost = pl.CostEstimate(
        flops=2 * batch * (n_feature * n_hidden + n_hidden * n_output),
        transcendentals=0,
        bytes_accessed=(batch * n_feature * itemsize_in
                        + batch * n_output * itemsize_out
                        + (n_hidden * n_feature + n_output * n_hidden) * itemsize_in
                        + (n_hidden + n_output) * 4),
    )

    kernel = functools.partial(
        _mlp_kernel,
        f_is_one=f_is_one, o_is_one=o_is_one,
        chunk=chunk, n_chunks=n_chunks,
    )

    yt = pl.pallas_call(
        kernel,
        out_shape=jax.ShapeDtypeStruct((n_output, batch), out_dtype),
        grid=grid,
        in_specs=[
            # x^T tile advances along the batch (lane) axis.
            pl.BlockSpec((n_feature, tb), lambda i: (0, i)),
            # Weights / biases stay resident in VMEM across the grid.
            pl.BlockSpec((n_hidden, n_feature), lambda i: (0, 0)),
            pl.BlockSpec((n_hidden, 1), lambda i: (0, 0)),
            pl.BlockSpec(w2_block, lambda i: (0, 0)),
            pl.BlockSpec((n_output, 1), lambda i: (0, 0)),
        ],
        out_specs=pl.BlockSpec((n_output, tb), lambda i: (0, i)),
        compiler_params=pltpu.CompilerParams(
            dimension_semantics=("parallel",)),
        cost_estimate=cost,
    )(xt, w1, b1_col, w2_arg, b2_col)

    # (O, batch) -> (batch, O); no padding was added so no slice is needed.
    return yt.T


if __name__ == "__main__":
    # Shapes implied by the module: x is (N, 1) after torch.unsqueeze(x, dim=1),
    # i.e. n_feature = 1. batch=1000 with block_batch=512 exercises a multi-step
    # grid AND a ragged (masked) last block; the default block_batch exercises
    # the inner multi-chunk loop.
    batch, n_feature, n_hidden, n_output = 1000, 1, 32, 1

    key = jax.random.PRNGKey(0)
    kx, k1, k2, k3, k4 = jax.random.split(key, 5)

    x = jax.random.normal(kx, (batch, n_feature), dtype=jnp.float32)

    # PyTorch Linear weight layout: (out_features, in_features).
    w1 = jax.random.normal(k1, (n_hidden, n_feature), dtype=jnp.float32) * 0.1
    b1 = jax.random.normal(k2, (n_hidden,), dtype=jnp.float32) * 0.1
    w2 = jax.random.normal(k3, (n_output, n_hidden), dtype=jnp.float32) * 0.1
    b2 = jax.random.normal(k4, (n_output,), dtype=jnp.float32) * 0.1

    # Reference in plain JAX (same math as the PyTorch module).
    ref = jnp.maximum(x @ w1.T + b1, 0.0) @ w2.T + b2

    # Multi-step grid + ragged last block.
    out_a = jax.block_until_ready(
        mlp_forward(x, w1, b1, w2, b2, block_batch=512))
    # Default large tile (single ragged block, 2 inner chunks).
    out_b = jax.block_until_ready(
        mlp_forward(x, w1, b1, w2, b2))

    assert out_a.shape == (batch, n_output)
    assert out_b.shape == (batch, n_output)
    assert jnp.allclose(out_a, ref, atol=1e-5, rtol=1e-5)
    assert jnp.allclose(out_b, ref, atol=1e-5, rtol=1e-5)

    print("KERNEL_OK")
</pallas_src>

<mosaic_0001>
module attributes {stable_mosaic.version = 11 : i64} {
  func.func @_mlp_kernel(%arg0: i32, %arg1: memref<1x512xf32, #tpu.memory_space<vmem>>, %arg2: memref<32x1xf32, #tpu.memory_space<vmem>>, %arg3: memref<32x1xf32, #tpu.memory_space<vmem>>, %arg4: memref<32x1xf32, #tpu.memory_space<vmem>>, %arg5: memref<1x1xf32, #tpu.memory_space<vmem>>, %arg6: memref<1x512xf32, #tpu.memory_space<vmem>>) attributes {dimension_semantics = [#tpu.dimension_semantics<parallel>], iteration_bounds = array<i64: 2>, scalar_prefetch = 0 : i64, scratch_operands = 0 : i64, tpu.core_type = #tpu.core_type<tc>, window_params = [{transform_indices = @transform_0, window_bounds = array<i64: 1, 512>}, {pipeline_mode = #tpu.pipeline_mode<synchronous>, transform_indices = @transform_1, window_bounds = array<i64: 32, 1>}, {pipeline_mode = #tpu.pipeline_mode<synchronous>, transform_indices = @transform_2, window_bounds = array<i64: 32, 1>}, {pipeline_mode = #tpu.pipeline_mode<synchronous>, transform_indices = @transform_3, window_bounds = array<i64: 32, 1>}, {pipeline_mode = #tpu.pipeline_mode<synchronous>, transform_indices = @transform_4, window_bounds = array<i64: 1, 1>}, {transform_indices = @transform_5, window_bounds = array<i64: 1, 512>}]} {
    %c0 = arith.constant 0 : index
    %c0_0 = arith.constant 0 : index
    %0 = vector.load %arg2[%c0, %c0_0] : memref<32x1xf32, #tpu.memory_space<vmem>>, vector<32x1xf32>
    %c0_1 = arith.constant 0 : index
    %c0_2 = arith.constant 0 : index
    %1 = vector.load %arg3[%c0_1, %c0_2] : memref<32x1xf32, #tpu.memory_space<vmem>>, vector<32x1xf32>
    %c0_3 = arith.constant 0 : index
    %c0_4 = arith.constant 0 : index
    %2 = vector.load %arg4[%c0_3, %c0_4] : memref<32x1xf32, #tpu.memory_space<vmem>>, vector<32x1xf32>
    %c0_5 = arith.constant 0 : index
    %c0_6 = arith.constant 0 : index
    %3 = vector.load %arg5[%c0_5, %c0_6] : memref<1x1xf32, #tpu.memory_space<vmem>>, vector<1x1xf32>
    %c0_i32 = arith.constant 0 : i32
    %c512_i32 = arith.constant 512 : i32
    %4 = arith.muli %c0_i32, %c512_i32 : i32
    %5 = tpu.assume_multiple %4, 512 : i32
    %c0_7 = arith.constant 0 : index
    %6 = arith.index_cast %5 : i32 to index
    %7 = vector.load %arg1[%c0_7, %6] : memref<1x512xf32, #tpu.memory_space<vmem>>, vector<1x512xf32>
    %8 = vector.broadcast %0 : vector<32x1xf32> to vector<32x512xf32>
    %9 = vector.broadcast %7 : vector<1x512xf32> to vector<32x512xf32>
    %10 = arith.mulf %8, %9 : vector<32x512xf32>
    %11 = vector.broadcast %1 : vector<32x1xf32> to vector<32x512xf32>
    %12 = arith.addf %10, %11 : vector<32x512xf32>
    %cst = arith.constant 0.000000e+00 : f32
    %13 = vector.broadcast %cst : f32 to vector<32x512xf32>
    %14 = arith.maximumf %12, %13 : vector<32x512xf32>
    %15 = vector.broadcast %2 : vector<32x1xf32> to vector<32x512xf32>
    %16 = arith.mulf %15, %14 : vector<32x512xf32>
    %cst_8 = arith.constant dense<0.000000e+00> : vector<512xf32>
    %17 = vector.multi_reduction <add>, %16, %cst_8 [0] : vector<32x512xf32> to vector<512xf32>
    %18 = vector.shape_cast %17 : vector<512xf32> to vector<1x512xf32>
    %19 = vector.broadcast %3 : vector<1x1xf32> to vector<1x512xf32>
    %20 = arith.addf %18, %19 : vector<1x512xf32>
    %c0_9 = arith.constant 0 : index
    %21 = arith.index_cast %5 : i32 to index
    %22 = vector.load %arg6[%c0_9, %21] : memref<1x512xf32, #tpu.memory_space<vmem>>, vector<1x512xf32>
    tpu.vector_store %arg6[%c0_9, %21], %20 {strides = array<i32>} : memref<1x512xf32, #tpu.memory_space<vmem>>, vector<1x512xf32>,
    %c1_i32 = arith.constant 1 : i32
    return
  }
  func.func @transform_0(%arg0: i32) -> (i32, i32) {
    %c0_i32 = arith.constant 0 : i32
    %c0_i32_0 = arith.constant 0 : i32
    return %c0_i32, %arg0 : i32, i32
  }
  func.func @transform_1(%arg0: i32) -> (i32, i32) {
    %c0_i32 = arith.constant 0 : i32
    %c0_i32_0 = arith.constant 0 : i32
    %c0_i32_1 = arith.constant 0 : i32
    return %c0_i32, %c0_i32_0 : i32, i32
  }
  func.func @transform_2(%arg0: i32) -> (i32, i32) {
    %c0_i32 = arith.constant 0 : i32
    %c0_i32_0 = arith.constant 0 : i32
    %c0_i32_1 = arith.constant 0 : i32
    return %c0_i32, %c0_i32_0 : i32, i32
  }
  func.func @transform_3(%arg0: i32) -> (i32, i32) {
    %c0_i32 = arith.constant 0 : i32
    %c0_i32_0 = arith.constant 0 : i32
    %c0_i32_1 = arith.constant 0 : i32
    return %c0_i32, %c0_i32_0 : i32, i32
  }
  func.func @transform_4(%arg0: i32) -> (i32, i32) {
    %c0_i32 = arith.constant 0 : i32
    %c0_i32_0 = arith.constant 0 : i32
    %c0_i32_1 = arith.constant 0 : i32
    return %c0_i32, %c0_i32_0 : i32, i32
  }
  func.func @transform_5(%arg0: i32) -> (i32, i32) {
    %c0_i32 = arith.constant 0 : i32
    %c0_i32_0 = arith.constant 0 : i32
    return %c0_i32, %arg0 : i32, i32
  }
}

</mosaic_0001>

<llo_original>
// kernel: tpu_custom_call.1
$region0: #{tpu_custom_call.1}
  #allocation0 [shape = 'u32[]', space=smem, size = 0x4, offset = 0x4, fixed_abs, tag = 'smem constant byte address 0x4 - core index']
  #allocation1 [shape = 'u32[144,128]{1,0:T(1,128)}', space=vmem, size = 0x12000, scoped, tag = 'internal scratch']
  #allocation2 [shape = 'f32[1,1]{1,0:T(1,128)S(1)}', space=vmem, size = 0x200, scoped, tag = 'scoped memory for tpu_custom_call.1']
  %s0 = inlined_call_operand.vmem [shape: f32[1,1000], index: 0, kind: input, shape index: {}]
  %s1 = inlined_call_operand.vmem [shape: f32[32,1], index: 1, kind: input, shape index: {}]
  %s2 = inlined_call_operand.vmem [shape: f32[32,1], index: 2, kind: input, shape index: {}]
  %s3 = inlined_call_operand.vmem [shape: f32[32,1], index: 3, kind: input, shape index: {}]
  %s4 = inlined_call_operand.<no memory space> [shape: f32[1,1], index: 4, kind: input, shape index: {}]
  %s5 = inlined_call_operand.hbm [shape: f32[1,1000], index: 5, kind: output, shape index: {}]
  %s6 = sld [smem:[#allocation0]]
  $region53: #{tpu_custom_call.1} parent=0
    _
  %s8 = ssub.s32 1, %s6
  %s9 = scalar_select 0, %s8, %s6
  %v10 = vstv %s4
  %11 = vst [vmem:[#allocation2] sm:$0x1] %v10
  $region1: #{tpu_custom_call.1} parent=0
    #allocation3 [shape = 'u8[4096]{0}', space=vmem, size = 0x1000, scoped, tag = 'output window, operand 0']
    #allocation4 [shape = 's32[2]{0}', space=sflag, size = 0x8, scoped, tag = 'scoped memory for tpu_custom_call.1']
    %12 = vsyncpa [#allocation4], 0
    %s13 = scalar_lea.sflag [#allocation4], 1
    %14 = vsyncpa %s13, 0
    loop: start=0, step=1, limit=4
    $region2: #{tpu_custom_call.1} parent=1 // loop_pre_header
      _
    $region3: #{tpu_custom_call.1} parent=1 // loop_header
      %s16 = sphi 0, %s20
      %p17 = scmp.ge.s32.totalorder %s16, 4
      %s26 = sphi 0, %s28
      %s29 = sphi 0, %s26
      %s30 = sphi 0, %s29
      %s46 = sphi 0, %s30
      %s50 = sphi 0, %s50
      %s52 = sphi 0, %s50
      %s53 = sphi 0, %s52
      %s67 = sphi 0, %s53
      %s71 = sphi 0, %s71
      %s73 = sphi 0, %s71
      %s74 = sphi 0, %s73
      %s88 = sphi 0, %s74
      %s92 = sphi 0, %s92
      %s94 = sphi 0, %s92
      %s95 = sphi 0, %s94
      %s109 = sphi 0, %s95
      %s113 = sphi 0, %s113
      %s115 = sphi 0, %s113
      %s116 = sphi 0, %s115
      %s130 = sphi 0, %s116
      %s136 = sphi 0, %s138
      %s139 = sphi 0, %s136
      %s140 = sphi 0, %s139
      %s156 = sphi 0, %s140
    $region4: #{tpu_custom_call.1} parent=1 // loop_header_branch
      %19 = sbr.rel (%p17) target = $region8
    $region5: #{tpu_custom_call.1} parent=1 // loop_body
      %s21 = ssub.s32 %s16, 1
      %s22 = ssub.s32 %s16, 2
      %s23 = sadd.s32 %s16, 1
      %s24 = ssub.s32 %s16, %s23
      %p25 = scmp.eq.s32.totalorder %s24, 0
      %s27 = sadd.s32 %s26, 1
      %s28 = scalar_select %p25, %s26, %s27
      %p31 = pneg %p25
      %p32 = scmp.eq.s32.totalorder %s16, 1
      %p33 = por %p31, %p32
      %p34 = scmp.ne.s32.totalorder %s26, %s29
      %p35 = scmp.eq.s32.totalorder %s16, 0
      %p36 = por %p34, %p35
      %p37 = scmp.ne.s32.totalorder %s26, %s29
      %p38 = scmp.eq.s32.totalorder %s21, 1
      %p39 = por %p37, %p38
      %p40 = scmp.ne.s32.totalorder %s29, %s30
      %p41 = scmp.eq.s32.totalorder %s21, 0
      %p42 = por %p40, %p41
      %p43 = scmp.ne.s32.totalorder %s29, %s30
      %p44 = scmp.eq.s32.totalorder %s22, 1
      %p45 = por %p43, %p44
      %p47 = scmp.ne.s32.totalorder %s30, %s46
      %p48 = scmp.eq.s32.totalorder %s22, 0
      %p49 = por %p47, %p48
      %s51 = sadd.s32 %s50, 1
      %p54 = scmp.eq.s32.totalorder %s16, 1
      %p55 = scmp.ne.s32.totalorder %s50, %s52
      %p56 = scmp.eq.s32.totalorder %s16, 0
      %p57 = por %p55, %p56
      %p58 = scmp.ne.s32.totalorder %s50, %s52
      %p59 = scmp.eq.s32.totalorder %s21, 1
      %p60 = por %p58, %p59
      %p61 = scmp.ne.s32.totalorder %s52, %s53
      %p62 = scmp.eq.s32.totalorder %s21, 0
      %p63 = por %p61, %p62
      %p64 = scmp.ne.s32.totalorder %s52, %s53
      %p65 = scmp.eq.s32.totalorder %s22, 1
      %p66 = por %p64, %p65
      %p68 = scmp.ne.s32.totalorder %s53, %s67
      %p69 = scmp.eq.s32.totalorder %s22, 0
      %p70 = por %p68, %p69
      %s72 = sadd.s32 %s71, 1
      %p75 = scmp.eq.s32.totalorder %s16, 1
      %p76 = scmp.ne.s32.totalorder %s71, %s73
      %p77 = scmp.eq.s32.totalorder %s16, 0
      %p78 = por %p76, %p77
      %p79 = scmp.ne.s32.totalorder %s71, %s73
      %p80 = scmp.eq.s32.totalorder %s21, 1
      %p81 = por %p79, %p80
      %p82 = scmp.ne.s32.totalorder %s73, %s74
      %p83 = scmp.eq.s32.totalorder %s21, 0
      %p84 = por %p82, %p83
      %p85 = scmp.ne.s32.totalorder %s73, %s74
      %p86 = scmp.eq.s32.totalorder %s22, 1
      %p87 = por %p85, %p86
      %p89 = scmp.ne.s32.totalorder %s74, %s88
      %p90 = scmp.eq.s32.totalorder %s22, 0
      %p91 = por %p89, %p90
      %s93 = sadd.s32 %s92, 1
      %p96 = scmp.eq.s32.totalorder %s16, 1
      %p97 = scmp.ne.s32.totalorder %s92, %s94
      %p98 = scmp.eq.s32.totalorder %s16, 0
      %p99 = por %p97, %p98
      %p100 = scmp.ne.s32.totalorder %s92, %s94
      %p101 = scmp.eq.s32.totalorder %s21, 1
      %p102 = por %p100, %p101
      %p103 = scmp.ne.s32.totalorder %s94, %s95
      %p104 = scmp.eq.s32.totalorder %s21, 0
      %p105 = por %p103, %p104
      %p106 = scmp.ne.s32.totalorder %s94, %s95
      %p107 = scmp.eq.s32.totalorder %s22, 1
      %p108 = por %p106, %p107
      %p110 = scmp.ne.s32.totalorder %s95, %s109
      %p111 = scmp.eq.s32.totalorder %s22, 0
      %p112 = por %p110, %p111
      %s114 = sadd.s32 %s113, 1
      %p117 = scmp.eq.s32.totalorder %s16, 1
      %p118 = scmp.ne.s32.totalorder %s113, %s115
      %p119 = scmp.eq.s32.totalorder %s16, 0
      %p120 = por %p118, %p119
      %p121 = scmp.ne.s32.totalorder %s113, %s115
      %p122 = scmp.eq.s32.totalorder %s21, 1
      %p123 = por %p121, %p122
      %p124 = scmp.ne.s32.totalorder %s115, %s116
      %p125 = scmp.eq.s32.totalorder %s21, 0
      %p126 = por %p124, %p125
      %p127 = scmp.ne.s32.totalorder %s115, %s116
      %p128 = scmp.eq.s32.totalorder %s22, 1
      %p129 = por %p127, %p128
      %p131 = scmp.ne.s32.totalorder %s116, %s130
      %p132 = scmp.eq.s32.totalorder %s22, 0
      %p133 = por %p131, %p132
      %s134 = ssub.s32 %s16, %s23
      %p135 = scmp.eq.s32.totalorder %s134, 0
      %s137 = sadd.s32 %s136, 1
      %s138 = scalar_select %p135, %s136, %s137
      %p141 = pneg %p135
      %p142 = scmp.eq.s32.totalorder %s16, 1
      %p143 = por %p141, %p142
      %p144 = scmp.ne.s32.totalorder %s136, %s139
      %p145 = scmp.eq.s32.totalorder %s16, 0
      %p146 = por %p144, %p145
      %p147 = scmp.ne.s32.totalorder %s136, %s139
      %p148 = scmp.eq.s32.totalorder %s21, 1
      %p149 = por %p147, %p148
      %p150 = scmp.ne.s32.totalorder %s139, %s140
      %p151 = scmp.eq.s32.totalorder %s21, 0
      %p152 = por %p150, %p151
      %p153 = scmp.ne.s32.totalorder %s139, %s140
      %p154 = scmp.eq.s32.totalorder %s22, 1
      %p155 = por %p153, %p154
      %p157 = scmp.ne.s32.totalorder %s140, %s156
      %p158 = scmp.eq.s32.totalorder %s22, 0
      %p159 = por %p157, %p158
      %p160 = scmp.le.s32.totalorder 1, %s16
      %p161 = scmp.lt.s32.totalorder %s16, 3
      %p162 = pnand %p160, %p161
      %p163 = pneg %p162
      // Predicated region
      $region9: #{tpu_custom_call.1} parent=5 // pred_check
        _
      $region10: #{tpu_custom_call.1} parent=5 // pred_check_branch
        %165 = sbr.rel (%p162) target = $region12
      $region11: #{tpu_custom_call.1} parent=5 // pred_region
        %s166 = ssub.s32 %s16, 1
        // Predicated region
        $region13: #{tpu_custom_call.1} parent=11 // pred_check
          %p167 = pneg %p63
        $region14: #{tpu_custom_call.1} parent=11 // pred_check_branch
          %169 = sbr.rel (%p167) target = $region16
        $region15: #{tpu_custom_call.1} parent=11 // pred_region
          _
        $region16: #{tpu_custom_call.1} parent=11 // pred_fallthru
          _
        // Predicated region
        $region17: #{tpu_custom_call.1} parent=11 // pred_check
          %p170 = pneg %p84
        $region18: #{tpu_custom_call.1} parent=11 // pred_check_branch
          %172 = sbr.rel (%p170) target = $region20
        $region19: #{tpu_custom_call.1} parent=11 // pred_region
          _
        $region20: #{tpu_custom_call.1} parent=11 // pred_fallthru
          _
        // Predicated region
        $region21: #{tpu_custom_call.1} parent=11 // pred_check
          %p173 = pneg %p105
        $region22: #{tpu_custom_call.1} parent=11 // pred_check_branch
          %175 = sbr.rel (%p173) target = $region24
        $region23: #{tpu_custom_call.1} parent=11 // pred_region
          _
        $region24: #{tpu_custom_call.1} parent=11 // pred_fallthru
          _
        // Predicated region
        $region25: #{tpu_custom_call.1} parent=11 // pred_check
          %p176 = pneg %p126
        $region26: #{tpu_custom_call.1} parent=11 // pred_check_branch
          %178 = sbr.rel (%p176) target = $region28
        $region27: #{tpu_custom_call.1} parent=11 // pred_region
          _
        $region28: #{tpu_custom_call.1} parent=11 // pred_fallthru
          _
      $region12: #{tpu_custom_call.1} parent=5 // pred_fallthru
        _
      %p179 = scmp.lt.s32.totalorder %s16, 2
      // Predicated region
      $region29: #{tpu_custom_call.1} parent=5 // pred_check
        %p180 = pneg %p179
      $region30: #{tpu_custom_call.1} parent=5 // pred_check_branch
        %182 = sbr.rel (%p180) target = $region32
      $region31: #{tpu_custom_call.1} parent=5 // pred_region
        // Predicated region
        $region33: #{tpu_custom_call.1} parent=31 // pred_check
          %p183 = pneg %p36
        $region34: #{tpu_custom_call.1} parent=31 // pred_check_branch
          %185 = sbr.rel (%p183) target = $region36
        $region35: #{tpu_custom_call.1} parent=31 // pred_region
          %s186 = smul.u32 4, %s16
          %p187 = scmp.lt.s32.totalorder %s186, 7
          %s188 = scalar_select %p187, %s186, 7
          %s189 = scalar_lea.vmem %s0, %s188
          %s190 = smul.u32 4, %s16
        $region36: #{tpu_custom_call.1} parent=31 // pred_fallthru
          _
      $region32: #{tpu_custom_call.1} parent=5 // pred_fallthru
        _
      %p191 = scmp.le.s32.totalorder 1, %s16
      %p192 = scmp.lt.s32.totalorder %s16, 3
      %p193 = pnand %p191, %p192
      %p194 = pneg %p193
      // Predicated region
      $region37: #{tpu_custom_call.1} parent=5 // pred_check
        _
      $region38: #{tpu_custom_call.1} parent=5 // pred_check_branch
        %196 = sbr.rel (%p193) target = $region40
      $region39: #{tpu_custom_call.1} parent=5 // pred_region
        %s197 = ssub.s32 %s16, 1
        %s198 = smul.u32 4, %s21
        %p199 = scmp.lt.s32.totalorder %s198, 7
        %s200 = scalar_select %p199, %s198, 7
        %s201 = scalar_lea.vmem %s0, %s200
        %p202 = pneg %p42
        %p203 = pneg %p39
        %p204 = pneg %p63
        %p205 = pneg %p60
        %p206 = pneg %p84
        %p207 = pneg %p81
        %p208 = pneg %p105
        %p209 = pneg %p102
        %p210 = pneg %p126
        %p211 = pneg %p123
        %p212 = pneg %p152
        %p213 = pneg %p149
        %s214 = sand.u32 %s139, 1
        %s215 = scalar_lea.sflag [#allocation4], %s214
        %s216 = sand.u32 %s139, 1
        %s217 = smul.addr %s216, 4
        %s218 = scalar_lea.vmem [#allocation3], %s217
        %s219 = smul.u32 4, %s21
        %p220 = scmp.lt.s32.totalorder %s219, 7
        %s221 = scalar_select %p220, %s219, 7
        %s222 = scalar_lea.vmem %s0, %s221
        %s223 = smul.u32 4, %s21
        %s224 = smul.u32 4, %s21
        %v225 = vld [vmem:[%s1] sm:$0xff]
        %v226 = vld [vmem:[%s1 + $0x8] sm:$0xff]
        %v227 = vld [vmem:[%s1 + $0x10] sm:$0xff]
        %v228 = vld [vmem:[%s1 + $0x18] sm:$0xff]
        %v229 = vld [vmem:[%s2] sm:$0xff]
        %v230 = vld [vmem:[%s2 + $0x8] sm:$0xff]
        %v231 = vld [vmem:[%s2 + $0x10] sm:$0xff]
        %v232 = vld [vmem:[%s2 + $0x18] sm:$0xff]
        %v233 = vld [vmem:[%s3] sm:$0xff]
        %v234 = vld [vmem:[%s3 + $0x8] sm:$0xff]
        %v235 = vld [vmem:[%s3 + $0x10] sm:$0xff]
        %v236 = vld [vmem:[%s3 + $0x18] sm:$0xff]
        %v237 = vld [vmem:[#allocation2] sm:$0x1]
        %v238 = vld [vmem:[%s222] sm:$0xf]
        %240 = vset.pattern.permute.xlu0 0
        %241 = vperm.xlu0 %240, %v225
        %v242 = vpop.permute.xlu0 %241
        %245 = vset.pattern.permute.xlu0 0
        %246 = vperm.xlu0 %245, %v226
        %v247 = vpop.permute.xlu0 %246
        %250 = vset.pattern.permute.xlu0 0
        %251 = vperm.xlu0 %250, %v227
        %v252 = vpop.permute.xlu0 %251
        %255 = vset.pattern.permute.xlu0 0
        %256 = vperm.xlu0 %255, %v228
        %v257 = vpop.permute.xlu0 %256
        %v260 = vlaneseq
        %v261 = vshrl.u32 %v260, 7
        %v262 = vsub.s32 0, %v261
        %v263 = vrot.slane %v238, %v262
        %v264 = vlaneseq
        %v265 = vshrl.u32 %v264, 7
        %v266 = vsub.s32 1, %v265
        %v267 = vrot.slane %v238, %v266
        %v268 = vlaneseq
        %v269 = vshrl.u32 %v268, 7
        %v270 = vsub.s32 2, %v269
        %v271 = vrot.slane %v238, %v270
        %v272 = vlaneseq
        %v273 = vshrl.u32 %v272, 7
        %v274 = vsub.s32 3, %v273
        %v275 = vrot.slane %v238, %v274
        %v280 = vmul.f32 %v242, %v263
        %v281 = vmul.f32 %v242, %v267
        %v282 = vmul.f32 %v242, %v271
        %v283 = vmul.f32 %v242, %v275
        %v284 = vmul.f32 %v247, %v263
        %v285 = vmul.f32 %v247, %v267
        %v286 = vmul.f32 %v247, %v271
        %v287 = vmul.f32 %v247, %v275
        %v288 = vmul.f32 %v252, %v263
        %v289 = vmul.f32 %v252, %v267
        %v290 = vmul.f32 %v252, %v271
        %v291 = vmul.f32 %v252, %v275
        %v292 = vmul.f32 %v257, %v263
        %v293 = vmul.f32 %v257, %v267
        %v294 = vmul.f32 %v257, %v271
        %v295 = vmul.f32 %v257, %v275
        %297 = vset.pattern.permute.xlu0 0
        %298 = vperm.xlu0 %297, %v229
        %v299 = vpop.permute.xlu0 %298
        %302 = vset.pattern.permute.xlu0 0
        %303 = vperm.xlu0 %302, %v230
        %v304 = vpop.permute.xlu0 %303
        %307 = vset.pattern.permute.xlu0 0
        %308 = vperm.xlu0 %307, %v231
        %v309 = vpop.permute.xlu0 %308
        %312 = vset.pattern.permute.xlu0 0
        %313 = vperm.xlu0 %312, %v232
        %v314 = vpop.permute.xlu0 %313
        %v316 = vadd.f32 %v280, %v299
        %v317 = vadd.f32 %v281, %v299
        %v318 = vadd.f32 %v282, %v299
        %v319 = vadd.f32 %v283, %v299
        %v320 = vadd.f32 %v284, %v304
        %v321 = vadd.f32 %v285, %v304
        %v322 = vadd.f32 %v286, %v304
        %v323 = vadd.f32 %v287, %v304
        %v324 = vadd.f32 %v288, %v309
        %v325 = vadd.f32 %v289, %v309
        %v326 = vadd.f32 %v290, %v309
        %v327 = vadd.f32 %v291, %v309
        %v328 = vadd.f32 %v292, %v314
        %v329 = vadd.f32 %v293, %v314
        %v330 = vadd.f32 %v294, %v314
        %v331 = vadd.f32 %v295, %v314
        %v332 = vmax.f32 %v316, 0.0
        %v333 = vmax.f32 %v317, 0.0
        %v334 = vmax.f32 %v318, 0.0
        %v335 = vmax.f32 %v319, 0.0
        %v336 = vmax.f32 %v320, 0.0
        %v337 = vmax.f32 %v321, 0.0
        %v338 = vmax.f32 %v322, 0.0
        %v339 = vmax.f32 %v323, 0.0
        %v340 = vmax.f32 %v324, 0.0
        %v341 = vmax.f32 %v325, 0.0
        %v342 = vmax.f32 %v326, 0.0
        %v343 = vmax.f32 %v327, 0.0
        %v344 = vmax.f32 %v328, 0.0
        %v345 = vmax.f32 %v329, 0.0
        %v346 = vmax.f32 %v330, 0.0
        %v347 = vmax.f32 %v331, 0.0
        %349 = vset.pattern.permute.xlu0 0
        %350 = vperm.xlu0 %349, %v233
        %v351 = vpop.permute.xlu0 %350
        %354 = vset.pattern.permute.xlu0 0
        %355 = vperm.xlu0 %354, %v234
        %v356 = vpop.permute.xlu0 %355
        %359 = vset.pattern.permute.xlu0 0
        %360 = vperm.xlu0 %359, %v235
        %v361 = vpop.permute.xlu0 %360
        %364 = vset.pattern.permute.xlu0 0
        %365 = vperm.xlu0 %364, %v236
        %v366 = vpop.permute.xlu0 %365
        %v368 = vmul.f32 %v351, %v332
        %v369 = vmul.f32 %v351, %v333
        %v370 = vmul.f32 %v351, %v334
        %v371 = vmul.f32 %v351, %v335
        %v372 = vmul.f32 %v356, %v336
        %v373 = vmul.f32 %v356, %v337
        %v374 = vmul.f32 %v356, %v338
        %v375 = vmul.f32 %v356, %v339
        %v376 = vmul.f32 %v361, %v340
        %v377 = vmul.f32 %v361, %v341
        %v378 = vmul.f32 %v361, %v342
        %v379 = vmul.f32 %v361, %v343
        %v380 = vmul.f32 %v366, %v344
        %v381 = vmul.f32 %v366, %v345
        %v382 = vmul.f32 %v366, %v346
        %v383 = vmul.f32 %v366, %v347
        %v384 = vadd.f32 %v368, %v372
        %v385 = vadd.f32 %v384, %v376
        %v386 = vadd.f32 %v385, %v380
        %v387 = vrot.slane %v386, 4
        %v388 = vadd.f32 %v386, %v387
        %v389 = vrot.slane %v388, 2
        %v390 = vadd.f32 %v388, %v389
        %v391 = vrot.slane %v390, 1
        %v392 = vadd.f32 %v390, %v391
        %v393 = vadd.f32 %v369, %v373
        %v394 = vadd.f32 %v393, %v377
        %v395 = vadd.f32 %v394, %v381
        %v396 = vrot.slane %v395, 4
        %v397 = vadd.f32 %v395, %v396
        %v398 = vrot.slane %v397, 2
        %v399 = vadd.f32 %v397, %v398
        %v400 = vrot.slane %v399, 1
        %v401 = vadd.f32 %v399, %v400
        %v402 = vadd.f32 %v370, %v374
        %v403 = vadd.f32 %v402, %v378
        %v404 = vadd.f32 %v403, %v382
        %v405 = vrot.slane %v404, 4
        %v406 = vadd.f32 %v404, %v405
        %v407 = vrot.slane %v406, 2
        %v408 = vadd.f32 %v406, %v407
        %v409 = vrot.slane %v408, 1
        %v410 = vadd.f32 %v408, %v409
        %v411 = vadd.f32 %v371, %v375
        %v412 = vadd.f32 %v411, %v379
        %v413 = vadd.f32 %v412, %v383
        %v414 = vrot.slane %v413, 4
        %v415 = vadd.f32 %v413, %v414
        %v416 = vrot.slane %v415, 2
        %v417 = vadd.f32 %v415, %v416
        %v418 = vrot.slane %v417, 1
        %v419 = vadd.f32 %v417, %v418
        %421 = vset.pattern.permute.xlu0 0
        %422 = vperm.xlu0 %421, %v237
        %v423 = vpop.permute.xlu0 %422
        %v425 = vlaneseq
        %v426 = vshrl.u32 %v425, 7
        %v427 = vsub.s32 0, %v426
        %v428 = vrot.slane %v423, %v427
        %v429 = vadd.f32 %v392, %v428
        %v430 = vadd.f32 %v401, %v428
        %v431 = vadd.f32 %v410, %v428
        %v432 = vadd.f32 %v419, %v428
        %v437 = vcombine.low %v429, %v430
        %v438 = vcombine.low %v431, %v432
        %v440 = vunpack.c.l.s4 1966171168
        %v441 = vunpack.c.0.s8 %v440
        %v442 = vlaneseq
        %v443 = vshrl.u32 %v442, 7
        %v444 = vsub.s32 %v441, %v443
        %v445 = vrot.slane %v437, %v444
        %v447 = vunpack.c.l.s4 1966171168
        %v448 = vunpack.c.0.s8 %v447
        %v449 = vlaneseq
        %v450 = vshrl.u32 %v449, 7
        %v451 = vsub.s32 %v448, %v450
        %v452 = vrot.slane %v438, %v451
        %v453 = vcombine.low %v445, %v452
        %v455 = vunpack.c.l.s4 1966171168
        %v456 = vunpack.c.0.s8 %v455
        %v457 = vlaneseq
        %v458 = vshrl.u32 %v457, 7
        %v459 = vsub.s32 %v456, %v458
        %v460 = vrot.slane %v453, %v459
        %v462 = vlaneseq
        %vm463 = vcmp.ge.s32.totalorder %v462, 0
        %vm464 = vcmp.lt.s32.totalorder %v462, 512
        %vm465 = vmand %vm463, %vm464
        %466 = vst.msk [vmem:[%s218] sm:$0xf] %vm465, %v460
        %s467 = sand.u32 %s139, 1
        %s468 = scalar_lea.sflag [#allocation4], %s467
        %s469 = sand.u32 %s139, 1
        %s470 = smul.addr %s469, 4
        %s471 = scalar_lea.vmem [#allocation3], %s470
        // Predicated region
        $region41: #{tpu_custom_call.1} parent=39 // pred_check
          %p472 = pneg %p149
        $region42: #{tpu_custom_call.1} parent=39 // pred_check_branch
          %474 = sbr.rel (%p472) target = $region44
        $region43: #{tpu_custom_call.1} parent=39 // pred_region
          %s475 = smul.u32 4, %s21
          %s477 = ssub.s32 64, 64
          %478 = vsyncadd %s468, %s477
          %s479 = smul.addr %s475, 16
          %s480 = scalar_lea.hbm %s5, %s479
          %s482 = sshll.u32 %s471, 4
          %s483 = int_to_ptr.vmem [resolvable:$true] %s482
          %485 = dma.vmem_to_hbm [thread:$0]  %s483, 64, %s480, %s468
        $region44: #{tpu_custom_call.1} parent=39 // pred_fallthru
          _
      $region40: #{tpu_custom_call.1} parent=5 // pred_fallthru
        _
      %p486 = scmp.le.s32.totalorder 2, %s16
      // Predicated region
      $region45: #{tpu_custom_call.1} parent=5 // pred_check
        %p487 = pneg %p486
      $region46: #{tpu_custom_call.1} parent=5 // pred_check_branch
        %489 = sbr.rel (%p487) target = $region48
      $region47: #{tpu_custom_call.1} parent=5 // pred_region
        %s490 = ssub.s32 %s16, 2
        // Predicated region
        $region49: #{tpu_custom_call.1} parent=47 // pred_check
          %p491 = pneg %p155
        $region50: #{tpu_custom_call.1} parent=47 // pred_check_branch
          %493 = sbr.rel (%p491) target = $region52
        $region51: #{tpu_custom_call.1} parent=47 // pred_region
          %s494 = sand.u32 %s140, 1
          %s495 = scalar_lea.sflag [#allocation4], %s494
          %s496 = sand.u32 %s140, 1
          %s497 = smul.addr %s496, 4
          %s498 = scalar_lea.vmem [#allocation3], %s497
          %499 = dma.done %s495, 64
        $region52: #{tpu_custom_call.1} parent=47 // pred_fallthru
          _
      $region48: #{tpu_custom_call.1} parent=5 // pred_fallthru
        _
    $region6: #{tpu_custom_call.1} parent=1 // loop_footer
      %s20 = sadd.s32 1, %s16
    $region7: #{tpu_custom_call.1} parent=1 // loop_footer_branch
      %15 = sbr.rel target = $region3
    $region8: #{tpu_custom_call.1} parent=1 // loop_exit
      _
    %500 = vsyncpa [#allocation4], 1
    %s501 = scalar_lea.sflag [#allocation4], 1
    %502 = vsyncpa %s501, 1

</llo_original>
